<compile_context>
chip_gen: v7x
topology: tpu7x:2x2x1
jax: 0.10.0
libtpu: 0.0.40
codegen_flags: <defaults>
</compile_context>

<pallas_src>
import jax
import jax.numpy as jnp
import numpy as np
from jax.experimental import pallas as pl
from jax.experimental.pallas import tpu as pltpu


def _round_up(v, m):
    return (v + m - 1) // m * m


def _rgat_attn_kernel(init_ref, adst_ref, asrc_ref, h_ref, adj_ref, out_ref):
    """Grid = (dst_tile i, relation r); out block resident across r."""
    r = pl.program_id(1)

    # Seed the resident accumulator with the self-loop Linear output
    # (+ all folded per-relation GAT biases), computed once in the wrapper.
    @pl.when(r == 0)
    def _():
        out_ref[...] = init_ref[...]

    a_dst = adst_ref[0]                           # (TM, 1)
    a_src = asrc_ref[0]                           # (1, Npad)
    e = a_dst + a_src                             # (TM, Npad) raw logits
    e = jnp.where(e >= 0.0, e, 0.2 * e)           # LeakyReLU(negative_slope=0.2)

    # int8 adjacency tile -> mask (dst x src).  int8->f32 convert is the
    # well-trodden lowering path; compare in f32.
    mask = adj_ref[0].astype(jnp.float32) > 0.5   # (TM, Npad)

    e = jnp.where(mask, e, jnp.float32(-1e30))    # large finite, never -inf

    # Softmax over incoming edges of each dst row.  Self-loops guarantee at
    # least one valid entry per real row; padded rows fall back to denom=1.
    e_max = jnp.max(e, axis=-1, keepdims=True)
    p = jnp.where(mask, jnp.exp(e - e_max), 0.0)
    denom = jnp.sum(p, axis=-1, keepdims=True)
    denom = jnp.where(denom > 0.0, denom, 1.0)
    alpha = p * pl.reciprocal(denom, approx=True)

    # Aggregate: (TM, Npad) x (Npad, Fpad) -> lane-dense (TM, 128k) output.
    out_ref[...] += jnp.dot(alpha, h_ref[0],
                            preferred_element_type=jnp.float32)


def rgat_conv(x, adj, w_sl, b_sl, w_rel, att_src, att_dst, b_rel):
    """RGATConv forward.

    x:       [N, Fin] node features
    adj:     [R, N, N] int8 dense mask, adj[r, dst, src] (self-loops included)
    w_sl:    [Fin, Fout], b_sl: [Fout]        self-loop Linear
    w_rel:   [R, Fin, Fout]                   per-relation GAT lin (no bias)
    att_src: [R, Fout], att_dst: [R, Fout]    attention vectors
    b_rel:   [R, Fout]                        per-relation GAT bias
    returns  [N, Fout] float32
    """
    x = x.astype(jnp.float32)
    N, Fin = x.shape
    R, _, Fout = w_rel.shape

    f_pad = _round_up(Fout, 128)                      # lane-dense feature dim
    n_pad = _round_up(N, 128)
    tile_m = next(t for t in (512, 256, 128) if n_pad % t == 0)
    num_tiles = n_pad // tile_m

    # ---------- plain-JAX prologue: one wide MXU matmul for all projections.
    w_sl_p = jnp.zeros((Fin, f_pad), jnp.float32).at[:, :Fout].set(w_sl)
    w_rel_p = jnp.zeros((R, Fin, f_pad), jnp.float32).at[:, :, :Fout].set(w_rel)
    w_all = jnp.concatenate([w_sl_p[None], w_rel_p], axis=0)      # (R+1,Fin,Fp)
    w_all = w_all.transpose(1, 0, 2).reshape(Fin, (R + 1) * f_pad)

    x_p = jnp.zeros((n_pad, Fin), jnp.float32).at[:N].set(x)
    h_cat = (x_p @ w_all).reshape(n_pad, R + 1, f_pad)

    b_sl_p = jnp.zeros((f_pad,), jnp.float32).at[:Fout].set(
        jnp.asarray(b_sl, jnp.float32).reshape(-1))
    b_rel_p = jnp.zeros((R, f_pad), jnp.float32).at[:, :Fout].set(b_rel)
    # Self-loop Linear output with every (constant) GAT bias folded in once.
    out_init = h_cat[:, 0, :] + (b_sl_p + b_rel_p.sum(axis=0))[None, :]

    h_all = h_cat[:, 1:, :].transpose(1, 0, 2)                    # (R,Np,Fp)
    att_src_p = jnp.zeros((R, f_pad), jnp.float32).at[:, :Fout].set(att_src)
    att_dst_p = jnp.zeros((R, f_pad), jnp.float32).at[:, :Fout].set(att_dst)
    a_dst = jnp.einsum('rnf,rf->rn', h_all, att_dst_p)[..., None]  # (R,Np,1)
    a_src = jnp.einsum('rnf,rf->rn', h_all, att_src_p)[:, None, :]  # (R,1,Np)

    adj_p = jnp.zeros((R, n_pad, n_pad), jnp.int8)
    adj_p = adj_p.at[:, :N, :N].set(adj.astype(jnp.int8))

    # ---------- VMEM budget (double-buffered inputs + f32 temporaries).
    est = (2 * tile_m * f_pad * 4      # out_init blocks
           + 2 * tile_m * 4            # a_dst
           + 2 * n_pad * 4             # a_src
           + 2 * n_pad * f_pad * 4     # H_r (all src rows of one relation)
           + 2 * tile_m * n_pad * 1    # int8 adjacency tile
           + 2 * tile_m * f_pad * 4    # output accumulator
           + 3 * tile_m * n_pad * 4)   # e / p / alpha temporaries
    vmem_limit = int(min(64 * 2**20, max(32 * 2**20, 2 * est)))

    out = pl.pallas_call(
        _rgat_attn_kernel,
        out_shape=jax.ShapeDtypeStruct((n_pad, f_pad), jnp.float32),
        grid=(num_tiles, R),
        in_specs=[
            pl.BlockSpec((tile_m, f_pad), lambda i, r: (i, 0)),        # out_init
            pl.BlockSpec((1, tile_m, 1), lambda i, r: (r, i, 0)),      # a_dst tile
            pl.BlockSpec((1, 1, n_pad), lambda i, r: (r, 0, 0)),       # a_src row
            pl.BlockSpec((1, n_pad, f_pad), lambda i, r: (r, 0, 0)),   # H_r (src)
            pl.BlockSpec((1, tile_m, n_pad), lambda i, r: (r, i, 0)),  # adj int8
        ],
        out_specs=pl.BlockSpec((tile_m, f_pad), lambda i, r: (i, 0)),
        compiler_params=pltpu.CompilerParams(
            dimension_semantics=("parallel", "arbitrary"),
            vmem_limit_bytes=vmem_limit),
    )(out_init, a_dst, a_src, h_all, adj_p)

    return out[:N, :Fout]


def build_adjacency(edge_index, edge_type, num_nodes, num_relations):
    """adj[r, dst, src] = 1 (int8) for edges of relation r; self-loops forced."""
    src, dst = edge_index[0], edge_index[1]
    adj = jnp.zeros((num_relations, num_nodes, num_nodes), jnp.int8)
    adj = adj.at[edge_type, dst, src].set(1)
    eye = jnp.eye(num_nodes, dtype=bool)[None]
    # remove-then-add self-loops per relation (PyG GATConv add_self_loops=True)
    adj = jnp.where(eye, jnp.int8(1), adj)
    return adj


def ref_rgat(x, adj, w_sl, b_sl, w_rel, att_src, att_dst, b_rel):
    out = x @ w_sl + b_sl[None, :]
    for r in range(adj.shape[0]):
        h = x @ w_rel[r]
        es = h @ att_src[r]
        ed = h @ att_dst[r]
        e = ed[:, None] + es[None, :]
        e = jnp.where(e >= 0, e, 0.2 * e)
        mask = adj[r] > 0
        e = jnp.where(mask, e, -jnp.inf)
        alpha = jax.nn.softmax(e, axis=-1)
        alpha = jnp.where(mask, alpha, 0.0)
        out = out + alpha @ h + b_rel[r][None, :]
    return out


if __name__ == "__main__":
    N, F_IN, F_OUT, R, E = 16, 8, 16, 3, 40

    key = jax.random.PRNGKey(0)
    ks = jax.random.split(key, 9)

    # Node features and a random multi-relational edge list.
    x = jax.random.normal(ks[0], (N, F_IN), jnp.float32)
    src = jax.random.randint(ks[1], (E,), 0, N)
    dst = jax.random.randint(ks[2], (E,), 0, N)
    edge_index = jnp.stack([src, dst], axis=0)          # [2, E] (source, target)
    edge_type = jax.random.randint(ks[3], (E,), 0, R)   # [E]

    # Deterministic synthetic parameters (shapes follow the PyTorch module).
    w_sl = jax.random.normal(ks[4], (F_IN, F_OUT), jnp.float32) * 0.1
    b_sl = jax.random.normal(ks[5], (F_OUT,), jnp.float32) * 0.1
    w_rel = jax.random.normal(ks[6], (R, F_IN, F_OUT), jnp.float32) * 0.1
    att_src = jax.random.normal(ks[7], (R, F_OUT), jnp.float32) * 0.1
    att_dst = jax.random.normal(ks[8], (R, F_OUT), jnp.float32) * 0.1
    b_rel = jnp.zeros((R, F_OUT), jnp.float32)

    adj = build_adjacency(edge_index, edge_type, N, R)

    out = rgat_conv(x, adj, w_sl, b_sl, w_rel, att_src, att_dst, b_rel)
    out = jax.block_until_ready(out)

    ref = ref_rgat(x, adj, w_sl, b_sl, w_rel, att_src, att_dst, b_rel)
    # Tolerance accounts for pl.reciprocal(approx=True) in the softmax.
    np.testing.assert_allclose(np.asarray(out), np.asarray(ref),
                               rtol=5e-3, atol=5e-3)

    print("KERNEL_OK")
</pallas_src>

<mosaic_0001>
module attributes {stable_mosaic.version = 11 : i64} {
  func.func @_rgat_attn_kernel(%arg0: i32, %arg1: i32, %arg2: memref<128x128xf32, #tpu.memory_space<vmem>>, %arg3: memref<1x128x1xf32, #tpu.memory_space<vmem>>, %arg4: memref<1x1x128xf32, #tpu.memory_space<vmem>>, %arg5: memref<1x128x128xf32, #tpu.memory_space<vmem>>, %arg6: memref<1x128x128xi8, #tpu.memory_space<vmem>>, %arg7: memref<128x128xf32, #tpu.memory_space<vmem>>) attributes {dimension_semantics = [#tpu.dimension_semantics<parallel>, #tpu.dimension_semantics<arbitrary>], iteration_bounds = array<i64: 1, 3>, scalar_prefetch = 0 : i64, scratch_operands = 0 : i64, tpu.core_type = #tpu.core_type<tc>, window_params = [{transform_indices = @transform_0, window_bounds = array<i64: 128, 128>}, {transform_indices = @transform_1, window_bounds = array<i64: 1, 128, 1>}, {transform_indices = @transform_2, window_bounds = array<i64: 1, 1, 128>}, {transform_indices = @transform_3, window_bounds = array<i64: 1, 128, 128>}, {transform_indices = @transform_4, window_bounds = array<i64: 1, 128, 128>}, {transform_indices = @transform_5, window_bounds = array<i64: 128, 128>}]} {
    %c0_i32 = arith.constant 0 : i32
    %0 = arith.cmpi eq, %arg1, %c0_i32 : i32
    %1 = arith.extui %0 : i1 to i32
    %c0_i32_0 = arith.constant 0 : i32
    %2 = arith.cmpi ne, %1, %c0_i32_0 : i32
    scf.if %2 {
      %c0_25 = arith.constant 0 : index
      %c0_26 = arith.constant 0 : index
      %44 = vector.load %arg2[%c0_25, %c0_26] : memref<128x128xf32, #tpu.memory_space<vmem>>, vector<128x128xf32>
      %c0_27 = arith.constant 0 : index
      %c0_28 = arith.constant 0 : index
      %45 = vector.load %arg7[%c0_27, %c0_28] : memref<128x128xf32, #tpu.memory_space<vmem>>, vector<128x128xf32>
      tpu.vector_store %arg7[%c0_27, %c0_28], %44 {strides = array<i32>} : memref<128x128xf32, #tpu.memory_space<vmem>>, vector<128x128xf32>,
    } else {
    }
    %c0 = arith.constant 0 : index
    %c0_1 = arith.constant 0 : index
    %c0_2 = arith.constant 0 : index
    %3 = vector.load %arg3[%c0, %c0_1, %c0_2] : memref<1x128x1xf32, #tpu.memory_space<vmem>>, vector<1x128x1xf32>
    %4 = vector.shape_cast %3 : vector<1x128x1xf32> to vector<128x1xf32>
    %c0_3 = arith.constant 0 : index
    %c0_4 = arith.constant 0 : index
    %c0_5 = arith.constant 0 : index
    %5 = vector.load %arg4[%c0_3, %c0_4, %c0_5] : memref<1x1x128xf32, #tpu.memory_space<vmem>>, vector<1x1x128xf32>
    %6 = vector.shape_cast %5 : vector<1x1x128xf32> to vector<1x128xf32>
    %7 = vector.broadcast %4 : vector<128x1xf32> to vector<128x128xf32>
    %8 = vector.broadcast %6 : vector<1x128xf32> to vector<128x128xf32>
    %9 = arith.addf %7, %8 : vector<128x128xf32>
    %cst = arith.constant 0.000000e+00 : f32
    %10 = vector.broadcast %cst : f32 to vector<128x128xf32>
    %11 = arith.cmpf oge, %9, %10 : vector<128x128xf32>
    %cst_6 = arith.constant 2.000000e-01 : f32
    %12 = vector.broadcast %cst_6 : f32 to vector<128x128xf32>
    %13 = arith.mulf %12, %9 : vector<128x128xf32>
    %14 = arith.select %11, %9, %13 : vector<128x128xi1>, vector<128x128xf32>
    %c0_7 = arith.constant 0 : index
    %c0_8 = arith.constant 0 : index
    %c0_9 = arith.constant 0 : index
    %15 = vector.load %arg6[%c0_7, %c0_8, %c0_9] : memref<1x128x128xi8, #tpu.memory_space<vmem>>, vector<1x128x128xi8>
    %16 = vector.shape_cast %15 : vector<1x128x128xi8> to vector<128x128xi8>
    %17 = arith.sitofp %16 : vector<128x128xi8> to vector<128x128xf32>
    %cst_10 = arith.constant 5.000000e-01 : f32
    %18 = vector.broadcast %cst_10 : f32 to vector<128x128xf32>
    %19 = arith.cmpf ogt, %17, %18 : vector<128x128xf32>
    %cst_11 = arith.constant -1.000000e+30 : f32
    %20 = vector.broadcast %cst_11 : f32 to vector<128x128xf32>
    %21 = arith.select %19, %14, %20 : vector<128x128xi1>, vector<128x128xf32>
    %cst_12 = arith.constant dense<0xFF800000> : vector<128xf32>
    %22 = vector.multi_reduction <maximumf>, %21, %cst_12 [1] : vector<128x128xf32> to vector<128xf32>
    %23 = vector.shape_cast %22 : vector<128xf32> to vector<128x1xf32>
    %24 = vector.broadcast %23 : vector<128x1xf32> to vector<128x128xf32>
    %25 = arith.subf %21, %24 : vector<128x128xf32>
    %26 = math.exp %25 : vector<128x128xf32>
    %cst_13 = arith.constant 0.000000e+00 : f32
    %27 = vector.broadcast %cst_13 : f32 to vector<128x128xf32>
    %28 = arith.select %19, %26, %27 : vector<128x128xi1>, vector<128x128xf32>
    %cst_14 = arith.constant dense<0.000000e+00> : vector<128xf32>
    %29 = vector.multi_reduction <add>, %28, %cst_14 [1] : vector<128x128xf32> to vector<128xf32>
    %30 = vector.shape_cast %29 : vector<128xf32> to vector<128x1xf32>
    %cst_15 = arith.constant 0.000000e+00 : f32
    %31 = vector.broadcast %cst_15 : f32 to vector<128x1xf32>
    %32 = arith.cmpf ogt, %30, %31 : vector<128x1xf32>
    %cst_16 = arith.constant 1.000000e+00 : f32
    %33 = vector.broadcast %cst_16 : f32 to vector<128x1xf32>
    %34 = arith.select %32, %30, %33 : vector<128x1xi1>, vector<128x1xf32>
    %35 = tpu.reciprocal %34 {approx = true} : vector<128x1xf32> -> vector<128x1xf32>
    %36 = vector.broadcast %35 : vector<128x1xf32> to vector<128x128xf32>
    %37 = arith.mulf %28, %36 : vector<128x128xf32>
    %c0_17 = arith.constant 0 : index
    %c0_18 = arith.constant 0 : index
    %38 = vector.load %arg7[%c0_17, %c0_18] : memref<128x128xf32, #tpu.memory_space<vmem>>, vector<128x128xf32>
    %c0_19 = arith.constant 0 : index
    %c0_20 = arith.constant 0 : index
    %c0_21 = arith.constant 0 : index
    %39 = vector.load %arg5[%c0_19, %c0_20, %c0_21] : memref<1x128x128xf32, #tpu.memory_space<vmem>>, vector<1x128x128xf32>
    %40 = vector.shape_cast %39 : vector<1x128x128xf32> to vector<128x128xf32>
    %cst_22 = arith.constant dense<0.000000e+00> : vector<128x128xf32>
    %41 = tpu.matmul %37, %40, %cst_22 {dimension_numbers = #tpu.dot_dimension_numbers<[1], [0], [0], [1], [0, 0, 1, 1], [], []>} : vector<128x128xf32>, vector<128x128xf32>, vector<128x128xf32> -> vector<128x128xf32>
    %42 = arith.addf %38, %41 : vector<128x128xf32>
    %c0_23 = arith.constant 0 : index
    %c0_24 = arith.constant 0 : index
    %43 = vector.load %arg7[%c0_23, %c0_24] : memref<128x128xf32, #tpu.memory_space<vmem>>, vector<128x128xf32>
    tpu.vector_store %arg7[%c0_23, %c0_24], %42 {strides = array<i32>} : memref<128x128xf32, #tpu.memory_space<vmem>>, vector<128x128xf32>,
    return
  }
  func.func @transform_0(%arg0: i32, %arg1: i32) -> (i32, i32) {
    %c0_i32 = arith.constant 0 : i32
    %c0_i32_0 = arith.constant 0 : i32
    return %arg0, %c0_i32 : i32, i32
  }
  func.func @transform_1(%arg0: i32, %arg1: i32) -> (i32, i32, i32) {
    %c0_i32 = arith.constant 0 : i32
    %c0_i32_0 = arith.constant 0 : i32
    return %arg1, %arg0, %c0_i32 : i32, i32, i32
  }
  func.func @transform_2(%arg0: i32, %arg1: i32) -> (i32, i32, i32) {
    %c0_i32 = arith.constant 0 : i32
    %c0_i32_0 = arith.constant 0 : i32
    %c0_i32_1 = arith.constant 0 : i32
    return %arg1, %c0_i32, %c0_i32_0 : i32, i32, i32
  }
  func.func @transform_3(%arg0: i32, %arg1: i32) -> (i32, i32, i32) {
    %c0_i32 = arith.constant 0 : i32
    %c0_i32_0 = arith.constant 0 : i32
    %c0_i32_1 = arith.constant 0 : i32
    return %arg1, %c0_i32, %c0_i32_0 : i32, i32, i32
  }
  func.func @transform_4(%arg0: i32, %arg1: i32) -> (i32, i32, i32) {
    %c0_i32 = arith.constant 0 : i32
    %c0_i32_0 = arith.constant 0 : i32
    return %arg1, %arg0, %c0_i32 : i32, i32, i32
  }
  func.func @transform_5(%arg0: i32, %arg1: i32) -> (i32, i32) {
    %c0_i32 = arith.constant 0 : i32
    %c0_i32_0 = arith.constant 0 : i32
    return %arg0, %c0_i32 : i32, i32
  }
}

</mosaic_0001>

<llo_original>
// kernel: tpu_custom_call.1
$region0: #{tpu_custom_call.1}
  #allocation0 [shape = 'u32[]', space=smem, size = 0x4, offset = 0x4, fixed_abs, tag = 'smem constant byte address 0x4 - core index']
  #allocation1 [shape = 'u32[144,128]{1,0:T(1,128)}', space=vmem, size = 0x12000, scoped, tag = 'internal scratch']
  %s0 = inlined_call_operand.hbm [shape: f32[128,128], index: 0, kind: input, shape index: {}]
  %s1 = inlined_call_operand.vmem [shape: f32[3,128,1], index: 1, kind: input, shape index: {}]
  %s2 = inlined_call_operand.vmem [shape: f32[3,1,128], index: 2, kind: input, shape index: {}]
  %s3 = inlined_call_operand.vmem [shape: f32[3,128,128], index: 3, kind: input, shape index: {}]
  %s4 = inlined_call_operand.hbm [shape: s8[3,128,128], index: 4, kind: input, shape index: {}]
  %s5 = inlined_call_operand.hbm [shape: f32[128,128], index: 5, kind: output, shape index: {}]
  %s6 = sld [smem:[#allocation0]]
  $region65: #{tpu_custom_call.1} parent=0
    _
  %s8 = ssub.s32 1, %s6
  %s9 = scalar_select 0, %s8, %s6
  $region1: #{tpu_custom_call.1} parent=0
    #allocation2 [shape = 'u8[65536]{0}', space=vmem, size = 0x10000, scoped, tag = 'input window, operand 0, single buffered']
    #allocation3 [shape = 's32[2]{0}', space=sflag, size = 0x8, scoped, tag = 'scoped memory for tpu_custom_call.1']
    #allocation4 [shape = 's32[2]{0}', space=sflag, size = 0x8, scoped, tag = 'scoped memory for tpu_custom_call.1']
    #allocation5 [shape = 'u8[32768]{0}', space=vmem, size = 0x8000, scoped, tag = 'input window, operand 4']
    #allocation6 [shape = 's32[2]{0}', space=sflag, size = 0x8, scoped, tag = 'scoped memory for tpu_custom_call.1']
    #allocation7 [shape = 'u8[65536]{0}', space=vmem, size = 0x10000, scoped, tag = 'output window, operand 0, single buffered']
    %10 = vsyncpa [#allocation3], 0
    %11 = vsyncpa [#allocation6], 0
    %s12 = scalar_lea.sflag [#allocation6], 1
    %13 = vsyncpa %s12, 0
    %14 = vsyncpa [#allocation4], 0
    loop: start=0, step=1, limit=5
    $region2: #{tpu_custom_call.1} parent=1 // loop_pre_header
      _
    $region3: #{tpu_custom_call.1} parent=1 // loop_header
      %s16 = sphi 0, %s20
      %p17 = scmp.ge.s32.totalorder %s16, 5
      %s23 = sphi 0, %s35
      %s24 = sphi 0, %s31
      %s25 = sphi 0, %s23
      %s26 = sphi 0, %s24
      %s27 = sphi 0, %s25
      %s28 = sphi 0, %s26
      %s38 = sphi 0, %s40
      %s41 = sphi 0, %s38
      %s42 = sphi 0, %s41
      %s58 = sphi 0, %s42
      %s66 = sphi 0, %s68
      %s69 = sphi 0, %s66
      %s70 = sphi 0, %s69
      %s86 = sphi 0, %s70
      %s92 = sphi 0, %s94
      %s95 = sphi 0, %s92
      %s96 = sphi 0, %s95
      %s112 = sphi 0, %s96
      %s118 = sphi 0, %s120
      %s121 = sphi 0, %s118
      %s122 = sphi 0, %s121
      %s138 = sphi 0, %s122
      %s146 = sphi 0, %s148
      %s149 = sphi 0, %s146
      %s150 = sphi 0, %s149
      %s166 = sphi 0, %s150
      %s172 = sphi 0, %s174
      %s175 = sphi 0, %s172
      %s176 = sphi 0, %s175
      %s192 = sphi 0, %s176
    $region4: #{tpu_custom_call.1} parent=1 // loop_header_branch
      %19 = sbr.rel (%p17) target = $region8
    $region5: #{tpu_custom_call.1} parent=1 // loop_body
      %s21 = ssub.s32 %s16, 1
      %s22 = ssub.s32 %s16, 2
      %s29 = sadd.s32 1, %s24
      %p30 = scmp.ge.s32.totalorder %s29, 3
      %s31 = scalar_select %p30, 0, %s29
      %s32 = sadd.s32 1, %s23
      %s33 = scalar_select %p30, %s32, %s23
      %p34 = scmp.ge.s32.totalorder %s33, 1
      %s35 = scalar_select %p34, 0, %s33
      %s36 = ssub.s32 %s23, %s35
      %p37 = scmp.eq.s32.totalorder %s36, 0
      %s39 = sadd.s32 %s38, 1
      %s40 = scalar_select %p37, %s38, %s39
      %p43 = pneg %p37
      %p44 = scmp.eq.s32.totalorder %s16, 2
      %p45 = por %p43, %p44
      %p46 = scmp.ne.s32.totalorder %s38, %s41
      %p47 = scmp.eq.s32.totalorder %s16, 0
      %p48 = por %p46, %p47
      %p49 = scmp.ne.s32.totalorder %s38, %s41
      %p50 = scmp.eq.s32.totalorder %s21, 2
      %p51 = por %p49, %p50
      %p52 = scmp.ne.s32.totalorder %s41, %s42
      %p53 = scmp.eq.s32.totalorder %s21, 0
      %p54 = por %p52, %p53
      %p55 = scmp.ne.s32.totalorder %s41, %s42
      %p56 = scmp.eq.s32.totalorder %s22, 2
      %p57 = por %p55, %p56
      %p59 = scmp.ne.s32.totalorder %s42, %s58
      %p60 = scmp.eq.s32.totalorder %s22, 0
      %p61 = por %p59, %p60
      %s62 = ssub.s32 %s24, %s31
      %s63 = ssub.s32 %s23, %s35
      %s64 = sor.u32 %s62, %s63
      %p65 = scmp.eq.s32.totalorder %s64, 0
      %s67 = sadd.s32 %s66, 1
      %s68 = scalar_select %p65, %s66, %s67
      %p71 = pneg %p65
      %p72 = scmp.eq.s32.totalorder %s16, 2
      %p73 = por %p71, %p72
      %p74 = scmp.ne.s32.totalorder %s66, %s69
      %p75 = scmp.eq.s32.totalorder %s16, 0
      %p76 = por %p74, %p75
      %p77 = scmp.ne.s32.totalorder %s66, %s69
      %p78 = scmp.eq.s32.totalorder %s21, 2
      %p79 = por %p77, %p78
      %p80 = scmp.ne.s32.totalorder %s69, %s70
      %p81 = scmp.eq.s32.totalorder %s21, 0
      %p82 = por %p80, %p81
      %p83 = scmp.ne.s32.totalorder %s69, %s70
      %p84 = scmp.eq.s32.totalorder %s22, 2
      %p85 = por %p83, %p84
      %p87 = scmp.ne.s32.totalorder %s70, %s86
      %p88 = scmp.eq.s32.totalorder %s22, 0
      %p89 = por %p87, %p88
      %s90 = ssub.s32 %s24, %s31
      %p91 = scmp.eq.s32.totalorder %s90, 0
      %s93 = sadd.s32 %s92, 1
      %s94 = scalar_select %p91, %s92, %s93
      %p97 = pneg %p91
      %p98 = scmp.eq.s32.totalorder %s16, 2
      %p99 = por %p97, %p98
      %p100 = scmp.ne.s32.totalorder %s92, %s95
      %p101 = scmp.eq.s32.totalorder %s16, 0
      %p102 = por %p100, %p101
      %p103 = scmp.ne.s32.totalorder %s92, %s95
      %p104 = scmp.eq.s32.totalorder %s21, 2
      %p105 = por %p103, %p104
      %p106 = scmp.ne.s32.totalorder %s95, %s96
      %p107 = scmp.eq.s32.totalorder %s21, 0
      %p108 = por %p106, %p107
      %p109 = scmp.ne.s32.totalorder %s95, %s96
      %p110 = scmp.eq.s32.totalorder %s22, 2
      %p111 = por %p109, %p110
      %p113 = scmp.ne.s32.totalorder %s96, %s112
      %p114 = scmp.eq.s32.totalorder %s22, 0
      %p115 = por %p113, %p114
      %s116 = ssub.s32 %s24, %s31
      %p117 = scmp.eq.s32.totalorder %s116, 0
      %s119 = sadd.s32 %s118, 1
      %s120 = scalar_select %p117, %s118, %s119
      %p123 = pneg %p117
      %p124 = scmp.eq.s32.totalorder %s16, 2
      %p125 = por %p123, %p124
      %p126 = scmp.ne.s32.totalorder %s118, %s121
      %p127 = scmp.eq.s32.totalorder %s16, 0
      %p128 = por %p126, %p127
      %p129 = scmp.ne.s32.totalorder %s118, %s121
      %p130 = scmp.eq.s32.totalorder %s21, 2
      %p131 = por %p129, %p130
      %p132 = scmp.ne.s32.totalorder %s121, %s122
      %p133 = scmp.eq.s32.totalorder %s21, 0
      %p134 = por %p132, %p133
      %p135 = scmp.ne.s32.totalorder %s121, %s122
      %p136 = scmp.eq.s32.totalorder %s22, 2
      %p137 = por %p135, %p136
      %p139 = scmp.ne.s32.totalorder %s122, %s138
      %p140 = scmp.eq.s32.totalorder %s22, 0
      %p141 = por %p139, %p140
      %s142 = ssub.s32 %s24, %s31
      %s143 = ssub.s32 %s23, %s35
      %s144 = sor.u32 %s142, %s143
      %p145 = scmp.eq.s32.totalorder %s144, 0
      %s147 = sadd.s32 %s146, 1
      %s148 = scalar_select %p145, %s146, %s147
      %p151 = pneg %p145
      %p152 = scmp.eq.s32.totalorder %s16, 2
      %p153 = por %p151, %p152
      %p154 = scmp.ne.s32.totalorder %s146, %s149
      %p155 = scmp.eq.s32.totalorder %s16, 0
      %p156 = por %p154, %p155
      %p157 = scmp.ne.s32.totalorder %s146, %s149
      %p158 = scmp.eq.s32.totalorder %s21, 2
      %p159 = por %p157, %p158
      %p160 = scmp.ne.s32.totalorder %s149, %s150
      %p161 = scmp.eq.s32.totalorder %s21, 0
      %p162 = por %p160, %p161
      %p163 = scmp.ne.s32.totalorder %s149, %s150
      %p164 = scmp.eq.s32.totalorder %s22, 2
      %p165 = por %p163, %p164
      %p167 = scmp.ne.s32.totalorder %s150, %s166
      %p168 = scmp.eq.s32.totalorder %s22, 0
      %p169 = por %p167, %p168
      %s170 = ssub.s32 %s23, %s35
      %p171 = scmp.eq.s32.totalorder %s170, 0
      %s173 = sadd.s32 %s172, 1
      %s174 = scalar_select %p171, %s172, %s173
      %p177 = pneg %p171
      %p178 = scmp.eq.s32.totalorder %s16, 2
      %p179 = por %p177, %p178
      %p180 = scmp.ne.s32.totalorder %s172, %s175
      %p181 = scmp.eq.s32.totalorder %s16, 0
      %p182 = por %p180, %p181
      %p183 = scmp.ne.s32.totalorder %s172, %s175
      %p184 = scmp.eq.s32.totalorder %s21, 2
      %p185 = por %p183, %p184
      %p186 = scmp.ne.s32.totalorder %s175, %s176
      %p187 = scmp.eq.s32.totalorder %s21, 0
      %p188 = por %p186, %p187
      %p189 = scmp.ne.s32.totalorder %s175, %s176
      %p190 = scmp.eq.s32.totalorder %s22, 2
      %p191 = por %p189, %p190
      %p193 = scmp.ne.s32.totalorder %s176, %s192
      %p194 = scmp.eq.s32.totalorder %s22, 0
      %p195 = por %p193, %p194
      %p196 = scmp.le.s32.totalorder 1, %s16
      %p197 = scmp.lt.s32.totalorder %s16, 4
      %p198 = pnand %p196, %p197
      %p199 = pneg %p198
      // Predicated region
      $region9: #{tpu_custom_call.1} parent=5 // pred_check
        _
      $region10: #{tpu_custom_call.1} parent=5 // pred_check_branch
        %201 = sbr.rel (%p198) target = $region12
      $region11: #{tpu_custom_call.1} parent=5 // pred_region
        %s202 = ssub.s32 %s16, 1
        // Predicated region
        $region13: #{tpu_custom_call.1} parent=11 // pred_check
          %p203 = pneg %p54
        $region14: #{tpu_custom_call.1} parent=11 // pred_check_branch
          %205 = sbr.rel (%p203) target = $region16
        $region15: #{tpu_custom_call.1} parent=11 // pred_region
          %s206 = smul.u32 16, %s25
          %s208 = ssub.s32 2048, 2048
          %209 = vsyncadd [#allocation3], %s208
          %s210 = smul.addr %s206, 128
          %s211 = scalar_lea.hbm %s0, %s210
          %s212 = sshll.u32 [#allocation2], 4
          %s213 = int_to_ptr.vmem [resolvable:$true] %s212
          %218 = dma.hbm_to_vmem [thread:$0]  %s211, 2048, %s213, [#allocation3], 128, 128, 8
        $region16: #{tpu_custom_call.1} parent=11 // pred_fallthru
          _
      $region12: #{tpu_custom_call.1} parent=5 // pred_fallthru
        _
      %p219 = scmp.lt.s32.totalorder %s16, 3
      // Predicated region
      $region17: #{tpu_custom_call.1} parent=5 // pred_check
        %p220 = pneg %p219
      $region18: #{tpu_custom_call.1} parent=5 // pred_check_branch
        %222 = sbr.rel (%p220) target = $region20
      $region19: #{tpu_custom_call.1} parent=5 // pred_region
        // Predicated region
        $region21: #{tpu_custom_call.1} parent=19 // pred_check
          %p223 = pneg %p76
        $region22: #{tpu_custom_call.1} parent=19 // pred_check_branch
          %225 = sbr.rel (%p223) target = $region24
        $region23: #{tpu_custom_call.1} parent=19 // pred_region
          %s226 = smul.u32 16, %s23
          %p227 = scmp.lt.s32.totalorder %s24, 2
          %s228 = scalar_select %p227, %s24, 2
          %p229 = scmp.lt.s32.totalorder %s226, 15
          %s230 = scalar_select %p229, %s226, 15
          %s231 = smul.addr %s228, 16
          %s232 = sadd.s32 %s230, %s231
          %s233 = smul.addr %s232, 8
          %s234 = scalar_lea.vmem %s1, %s233
          %s235 = smul.u32 16, %s23
        $region24: #{tpu_custom_call.1} parent=19 // pred_fallthru
          _
        // Predicated region
        $region25: #{tpu_custom_call.1} parent=19 // pred_check
          %p236 = pneg %p102
        $region26: #{tpu_custom_call.1} parent=19 // pred_check_branch
          %238 = sbr.rel (%p236) target = $region28
        $region27: #{tpu_custom_call.1} parent=19 // pred_region
          %p239 = scmp.lt.s32.totalorder %s24, 2
          %s240 = scalar_select %p239, %s24, 2
          %s241 = scalar_lea.vmem %s2, %s240
        $region28: #{tpu_custom_call.1} parent=19 // pred_fallthru
          _
        // Predicated region
        $region29: #{tpu_custom_call.1} parent=19 // pred_check
          %p242 = pneg %p128
        $region30: #{tpu_custom_call.1} parent=19 // pred_check_branch
          %244 = sbr.rel (%p242) target = $region32
        $region31: #{tpu_custom_call.1} parent=19 // pred_region
          %p245 = scmp.lt.s32.totalorder %s24, 2
          %s246 = scalar_select %p245, %s24, 2
          %s247 = smul.addr %s246, 16
          %s248 = smul.addr %s247, 8
          %s249 = scalar_lea.vmem %s3, %s248
        $region32: #{tpu_custom_call.1} parent=19 // pred_fallthru
          _
        // Predicated region
        $region33: #{tpu_custom_call.1} parent=19 // pred_check
          %p250 = pneg %p156
        $region34: #{tpu_custom_call.1} parent=19 // pred_check_branch
          %252 = sbr.rel (%p250) target = $region36
        $region35: #{tpu_custom_call.1} parent=19 // pred_region
          %s253 = sand.u32 %s146, 1
          %s254 = scalar_lea.sflag [#allocation6], %s253
          %s255 = sand.u32 %s146, 1
          %s256 = smul.addr %s255, 32
          %s257 = scalar_lea.vmem [#allocation5], %s256
          %s258 = smul.u32 4, %s23
          %s260 = ssub.s32 512, 512
          %261 = vsyncadd %s254, %s260
          %s262 = smul.addr %s24, 4
          %s263 = sadd.s32 %s258, %s262
          %s264 = smul.addr %s263, 128
          %s265 = scalar_lea.hbm %s4, %s264
          %s266 = sshll.u32 %s257, 4
          %s267 = int_to_ptr.vmem [resolvable:$true] %s266
          %272 = dma.hbm_to_vmem [thread:$0]  %s265, 512, %s267, %s254, 128, 128, 8
        $region36: #{tpu_custom_call.1} parent=19 // pred_fallthru
          _
      $region20: #{tpu_custom_call.1} parent=5 // pred_fallthru
        _
      %p273 = scmp.le.s32.totalorder 1, %s16
      %p274 = scmp.lt.s32.totalorder %s16, 4
      %p275 = pnand %p273, %p274
      %p276 = pneg %p275
      // Predicated region
      $region37: #{tpu_custom_call.1} parent=5 // pred_check
        _
      $region38: #{tpu_custom_call.1} parent=5 // pred_check_branch
        %278 = sbr.rel (%p275) target = $region40
      $region39: #{tpu_custom_call.1} parent=5 // pred_region
        %s279 = ssub.s32 %s16, 1
        // Predicated region
        $region41: #{tpu_custom_call.1} parent=39 // pred_check
          %p280 = pneg %p54
        $region42: #{tpu_custom_call.1} parent=39 // pred_check_branch
          %282 = sbr.rel (%p280) target = $region44
        $region43: #{tpu_custom_call.1} parent=39 // pred_region
          %283 = dma.done [#allocation3], 2048
        $region44: #{tpu_custom_call.1} parent=39 // pred_fallthru
          _
        %s284 = sand.u32 %s149, 1
        %s285 = scalar_lea.sflag [#allocation6], %s284
        %s286 = sand.u32 %s149, 1
        %s287 = smul.addr %s286, 32
        %s288 = scalar_lea.vmem [#allocation5], %s287
        // Predicated region
        $region45: #{tpu_custom_call.1} parent=39 // pred_check
          %p289 = pneg %p162
        $region46: #{tpu_custom_call.1} parent=39 // pred_check_branch
          %291 = sbr.rel (%p289) target = $region48
        $region47: #{tpu_custom_call.1} parent=39 // pred_region
          %292 = dma.done %s285, 512
        $region48: #{tpu_custom_call.1} parent=39 // pred_fallthru
          _
        %p293 = pneg %p54
        %p294 = pneg %p51
        %s295 = smul.u32 16, %s25
        %p296 = scmp.lt.s32.totalorder %s26, 2
        %s297 = scalar_select %p296, %s26, 2
        %p298 = scmp.lt.s32.totalorder %s295, 15
        %s299 = scalar_select %p298, %s295, 15
        %s300 = smul.addr %s297, 16
        %s301 = sadd.s32 %s299, %s300
        %s302 = smul.addr %s301, 8
        %s303 = scalar_lea.vmem %s1, %s302
        %p304 = pneg %p82
        %p305 = pneg %p79
        %p306 = scmp.lt.s32.totalorder %s26, 2
        %s307 = scalar_select %p306, %s26, 2
        %s308 = scalar_lea.vmem %s2, %s307
        %p309 = pneg %p108
        %p310 = pneg %p105
        %p311 = scmp.lt.s32.totalorder %s26, 2
        %s312 = scalar_select %p311, %s26, 2
        %s313 = smul.addr %s312, 16
        %s314 = smul.addr %s313, 8
        %s315 = scalar_lea.vmem %s3, %s314
        %p316 = pneg %p134
        %p317 = pneg %p131
        %s318 = sand.u32 %s149, 1
        %s319 = scalar_lea.sflag [#allocation6], %s318
        %s320 = sand.u32 %s149, 1
        %s321 = smul.addr %s320, 32
        %s322 = scalar_lea.vmem [#allocation5], %s321
        %p323 = pneg %p162
        %p324 = pneg %p159
        %p325 = pneg %p188
        %p326 = pneg %p185
        %s327 = smul.u32 16, %s25
        %s328 = smul.u32 16, %s25
        %p329 = scmp.lt.s32.totalorder %s26, 2
        %s330 = scalar_select %p329, %s26, 2
        %p331 = scmp.lt.s32.totalorder %s328, 15
        %s332 = scalar_select %p331, %s328, 15
        %s333 = smul.addr %s330, 16
        %s334 = sadd.s32 %s332, %s333
        %s335 = smul.addr %s334, 8
        %s336 = scalar_lea.vmem %s1, %s335
        %s337 = smul.u32 16, %s25
        %p338 = scmp.lt.s32.totalorder %s26, 2
        %s339 = scalar_select %p338, %s26, 2
        %s340 = scalar_lea.vmem %s2, %s339
        %p341 = scmp.lt.s32.totalorder %s26, 2
        %s342 = scalar_select %p341, %s26, 2
        %s343 = smul.addr %s342, 16
        %s344 = smul.addr %s343, 8
        %s345 = scalar_lea.vmem %s3, %s344
        %s346 = smul.u32 4, %s25
        %s347 = smul.u32 16, %s25
        %p348 = scmp.eq.s32.totalorder %s26, 0
        // Predicated region
        $region49: #{tpu_custom_call.1} parent=39 // pred_check
          %p349 = pneg %p348
        $region50: #{tpu_custom_call.1} parent=39 // pred_check_branch
          %351 = sbr.rel (%p349) target = $region52
        $region51: #{tpu_custom_call.1} parent=39 // pred_region
          %v352 = vld [vmem:[#allocation2] sm:$0xff]
          %v353 = vld [vmem:[#allocation2 + $0x8] sm:$0xff]
          %v354 = vld [vmem:[#allocation2 + $0x10] sm:$0xff]
          %v355 = vld [vmem:[#allocation2 + $0x18] sm:$0xff]
          %v356 = vld [vmem:[#allocation2 + $0x20] sm:$0xff]
          %v357 = vld [vmem:[#allocation2 + $0x28] sm:$0xff]
          %v358 = vld [vmem:[#allocation2 + $0x30] sm:$0xff]
          %v359 = vld [vmem:[#allocation2 + $0x38] sm:$0xff]
          %v360 = vld [vmem:[#allocation2 + $0x40] sm:$0xff]
          %v361 = vld [vmem:[#allocation2 + $0x48] sm:$0xff]
          %v362 = vld [vmem:[#allocation2 + $0x50] sm:$0xff]
          %v363 = vld [vmem:[#allocation2 + $0x58] sm:$0xff]
          %v364 = vld [vmem:[#allocation2 + $0x60] sm:$0xff]
          %v365 = vld [vmem:[#allocation2 + $0x68] sm:$0xff]
          %v366 = vld [vmem:[#allocation2 + $0x70] sm:$0xff]
          %v367 = vld [vmem:[#allocation2 + $0x78] sm:$0xff]
          %368 = vst [vmem:[#allocation7] sm:$0xff] %v352
          %369 = vst [vmem:[#allocation7 + $0x8] sm:$0xff] %v353
          %370 = vst [vmem:[#allocation7 + $0x10] sm:$0xff] %v354
          %371 = vst [vmem:[#allocation7 + $0x18] sm:$0xff] %v355
          %372 = vst [vmem:[#allocation7 + $0x20] sm:$0xff] %v356
          %373 = vst [vmem:[#allocation7 + $0x28] sm:$0xff] %v357
          %374 = vst [vmem:[#allocation7 + $0x30] sm:$0xff] %v358
          %375 = vst [vmem:[#allocation7 + $0x38] sm:$0xff] %v359
          %376 = vst [vmem:[#allocation7 + $0x40] sm:$0xff] %v360
          %377 = vst [vmem:[#allocation7 + $0x48] sm:$0xff] %v361
          %378 = vst [vmem:[#allocation7 + $0x50] sm:$0xff] %v362
          %379 = vst [vmem:[#allocation7 + $0x58] sm:$0xff] %v363
          %380 = vst [vmem:[#allocation7 + $0x60] sm:$0xff] %v364
          %381 = vst [vmem:[#allocation7 + $0x68] sm:$0xff] %v365
          %382 = vst [vmem:[#allocation7 + $0x70] sm:$0xff] %v366
          %383 = vst [vmem:[#allocation7 + $0x78] sm:$0xff] %v367
        $region52: #{tpu_custom_call.1} parent=39 // pred_fallthru
          _
        %v384 = vld [vmem:[%s336] sm:$0xff]
        %v385 = vld [vmem:[%s336 + $0x8] sm:$0xff]
        %v386 = vld [vmem:[%s336 + $0x10] sm:$0xff]
        %v387 = vld [vmem:[%s336 + $0x18] sm:$0xff]
        %v388 = vld [vmem:[%s336 + $0x20] sm:$0xff]
        %v389 = vld [vmem:[%s336 + $0x28] sm:$0xff]
        %v390 = vld [vmem:[%s336 + $0x30] sm:$0xff]
        %v391 = vld [vmem:[%s336 + $0x38] sm:$0xff]
        %v392 = vld [vmem:[%s336 + $0x40] sm:$0xff]
        %v393 = vld [vmem:[%s336 + $0x48] sm:$0xff]
        %v394 = vld [vmem:[%s336 + $0x50] sm:$0xff]
        %v395 = vld [vmem:[%s336 + $0x58] sm:$0xff]
        %v396 = vld [vmem:[%s336 + $0x60] sm:$0xff]
        %v397 = vld [vmem:[%s336 + $0x68] sm:$0xff]
        %v398 = vld [vmem:[%s336 + $0x70] sm:$0xff]
        %v399 = vld [vmem:[%s336 + $0x78] sm:$0xff]
        %v400 = vld [vmem:[%s340] sm:$0x1]
        %402 = vset.pattern.permute.xlu0 0
        %403 = vperm.xlu0 %402, %v384
        %v404 = vpop.permute.xlu0 %403
        %407 = vset.pattern.permute.xlu0 0
        %408 = vperm.xlu0 %407, %v385
        %v409 = vpop.permute.xlu0 %408
        %412 = vset.pattern.permute.xlu0 0
        %413 = vperm.xlu0 %412, %v386
        %v414 = vpop.permute.xlu0 %413
        %417 = vset.pattern.permute.xlu0 0
        %418 = vperm.xlu0 %417, %v387
        %v419 = vpop.permute.xlu0 %418
        %422 = vset.pattern.permute.xlu0 0
        %423 = vperm.xlu0 %422, %v388
        %v424 = vpop.permute.xlu0 %423
        %427 = vset.pattern.permute.xlu0 0
        %428 = vperm.xlu0 %427, %v389
        %v429 = vpop.permute.xlu0 %428
        %432 = vset.pattern.permute.xlu0 0
        %433 = vperm.xlu0 %432, %v390
        %v434 = vpop.permute.xlu0 %433
        %437 = vset.pattern.permute.xlu0 0
        %438 = vperm.xlu0 %437, %v391
        %v439 = vpop.permute.xlu0 %438
        %442 = vset.pattern.permute.xlu0 0
        %443 = vperm.xlu0 %442, %v392
        %v444 = vpop.permute.xlu0 %443
        %447 = vset.pattern.permute.xlu0 0
        %448 = vperm.xlu0 %447, %v393
        %v449 = vpop.permute.xlu0 %448
        %452 = vset.pattern.permute.xlu0 0
        %453 = vperm.xlu0 %452, %v394
        %v454 = vpop.permute.xlu0 %453
        %457 = vset.pattern.permute.xlu0 0
        %458 = vperm.xlu0 %457, %v395
        %v459 = vpop.permute.xlu0 %458
        %462 = vset.pattern.permute.xlu0 0
        %463 = vperm.xlu0 %462, %v396
        %v464 = vpop.permute.xlu0 %463
        %467 = vset.pattern.permute.xlu0 0
        %468 = vperm.xlu0 %467, %v397
        %v469 = vpop.permute.xlu0 %468
        %472 = vset.pattern.permute.xlu0 0
        %473 = vperm.xlu0 %472, %v398
        %v474 = vpop.permute.xlu0 %473
        %477 = vset.pattern.permute.xlu0 0
        %478 = vperm.xlu0 %477, %v399
        %v479 = vpop.permute.xlu0 %478
        %v482 = vlaneseq
        %v483 = vshrl.u32 %v482, 7
        %v484 = vsub.s32 0, %v483
        %v485 = vrot.slane %v400, %v484
        %v487 = vadd.f32 %v404, %v485
        %v488 = vadd.f32 %v409, %v485
        %v489 = vadd.f32 %v414, %v485
        %v490 = vadd.f32 %v419, %v485
        %v491 = vadd.f32 %v424, %v485
        %v492 = vadd.f32 %v429, %v485
        %v493 = vadd.f32 %v434, %v485
        %v494 = vadd.f32 %v439, %v485
        %v495 = vadd.f32 %v444, %v485
        %v496 = vadd.f32 %v449, %v485
        %v497 = vadd.f32 %v454, %v485
        %v498 = vadd.f32 %v459, %v485
        %v499 = vadd.f32 %v464, %v485
        %v500 = vadd.f32 %v469, %v485
        %v501 = vadd.f32 %v474, %v485
        %v502 = vadd.f32 %v479, %v485
        %vm503 = vcmp.ge.f32.partialorder %v487, 0.0
        %vm504 = vcmp.ge.f32.partialorder %v488, 0.0
        %vm505 = vcmp.ge.f32.partialorder %v489, 0.0
        %vm506 = vcmp.ge.f32.partialorder %v490, 0.0
        %vm507 = vcmp.ge.f32.partialorder %v491, 0.0
        %vm508 = vcmp.ge.f32.partialorder %v492, 0.0
        %vm509 = vcmp.ge.f32.partialorder %v493, 0.0
        %vm510 = vcmp.ge.f32.partialorder %v494, 0.0
        %vm511 = vcmp.ge.f32.partialorder %v495, 0.0
        %vm512 = vcmp.ge.f32.partialorder %v496, 0.0
        %vm513 = vcmp.ge.f32.partialorder %v497, 0.0
        %vm514 = vcmp.ge.f32.partialorder %v498, 0.0
        %vm515 = vcmp.ge.f32.partialorder %v499, 0.0
        %vm516 = vcmp.ge.f32.partialorder %v500, 0.0
        %vm517 = vcmp.ge.f32.partialorder %v501, 0.0
        %vm518 = vcmp.ge.f32.partialorder %v502, 0.0
        %v519 = vmul.f32 %v487, 0.2
        %v520 = vmul.f32 %v488, 0.2
        %v521 = vmul.f32 %v489, 0.2
        %v522 = vmul.f32 %v490, 0.2
        %v523 = vmul.f32 %v491, 0.2
        %v524 = vmul.f32 %v492, 0.2
        %v525 = vmul.f32 %v493, 0.2
        %v526 = vmul.f32 %v494, 0.2
        %v527 = vmul.f32 %v495, 0.2
        %v528 = vmul.f32 %v496, 0.2
        %v529 = vmul.f32 %v497, 0.2
        %v530 = vmul.f32 %v498, 0.2
        %v531 = vmul.f32 %v499, 0.2
        %v532 = vmul.f32 %v500, 0.2
        %v533 = vmul.f32 %v501, 0.2
        %v534 = vmul.f32 %v502, 0.2
        %v535 = vsel %vm503, %v487, %v519
        %v536 = vsel %vm504, %v488, %v520
        %v537 = vsel %vm505, %v489, %v521
        %v538 = vsel %vm506, %v490, %v522
        %v539 = vsel %vm507, %v491, %v523
        %v540 = vsel %vm508, %v492, %v524
        %v541 = vsel %vm509, %v493, %v525
        %v542 = vsel %vm510, %v494, %v526
        %v543 = vsel %vm511, %v495, %v527
        %v544 = vsel %vm512, %v496, %v528
        %v545 = vsel %vm513, %v497, %v529
        %v546 = vsel %vm514, %v498, %v530
        %v547 = vsel %vm515, %v499, %v531
        %v548 = vsel %vm516, %v500, %v532
        %v549 = vsel %vm517, %v501, %v533
        %v550 = vsel %vm518, %v502, %v534
        %v551 = vld [vmem:[%s288] sm:$0xff]
        %v552 = vld [vmem:[%s288 + $0x8] sm:$0xff]
        %v553 = vld [vmem:[%s288 + $0x10] sm:$0xff]
        %v554 = vld [vmem:[%s288 + $0x18] sm:$0xff]
        %v555 = vunpack.c.0.s8 %v551
        %v556 = vunpack.c.1.s8 %v551
        %v557 = vunpack.c.2.s8 %v551
        %v558 = vunpack.c.3.s8 %v551
        %v559 = vunpack.c.0.s8 %v552
        %v560 = vunpack.c.1.s8 %v552
        %v561 = vunpack.c.2.s8 %v552
        %v562 = vunpack.c.3.s8 %v552
        %v563 = vunpack.c.0.s8 %v553
        %v564 = vunpack.c.1.s8 %v553
        %v565 = vunpack.c.2.s8 %v553
        %v566 = vunpack.c.3.s8 %v553
        %v567 = vunpack.c.0.s8 %v554
        %v568 = vunpack.c.1.s8 %v554
        %v569 = vunpack.c.2.s8 %v554
        %v570 = vunpack.c.3.s8 %v554
        %v571 = vcvt.s32.f32 %v555
        %v572 = vcvt.s32.f32 %v556
        %v573 = vcvt.s32.f32 %v557
        %v574 = vcvt.s32.f32 %v558
        %v575 = vcvt.s32.f32 %v559
        %v576 = vcvt.s32.f32 %v560
        %v577 = vcvt.s32.f32 %v561
        %v578 = vcvt.s32.f32 %v562
        %v579 = vcvt.s32.f32 %v563
        %v580 = vcvt.s32.f32 %v564
        %v581 = vcvt.s32.f32 %v565
        %v582 = vcvt.s32.f32 %v566
        %v583 = vcvt.s32.f32 %v567
        %v584 = vcvt.s32.f32 %v568
        %v585 = vcvt.s32.f32 %v569
        %v586 = vcvt.s32.f32 %v570
        %vm587 = vcmp.gt.f32.partialorder %v571, 0.5
        %vm588 = vcmp.gt.f32.partialorder %v572, 0.5
        %vm589 = vcmp.gt.f32.partialorder %v573, 0.5
        %vm590 = vcmp.gt.f32.partialorder %v574, 0.5
        %vm591 = vcmp.gt.f32.partialorder %v575, 0.5
        %vm592 = vcmp.gt.f32.partialorder %v576, 0.5
        %vm593 = vcmp.gt.f32.partialorder %v577, 0.5
        %vm594 = vcmp.gt.f32.partialorder %v578, 0.5
        %vm595 = vcmp.gt.f32.partialorder %v579, 0.5
        %vm596 = vcmp.gt.f32.partialorder %v580, 0.5
        %vm597 = vcmp.gt.f32.partialorder %v581, 0.5
        %vm598 = vcmp.gt.f32.partialorder %v582, 0.5
        %vm599 = vcmp.gt.f32.partialorder %v583, 0.5
        %vm600 = vcmp.gt.f32.partialorder %v584, 0.5
        %vm601 = vcmp.gt.f32.partialorder %v585, 0.5
        %vm602 = vcmp.gt.f32.partialorder %v586, 0.5
        %v603 = vsel %vm587, %v535, -1e+30
        %v604 = vsel %vm588, %v536, -1e+30
        %v605 = vsel %vm589, %v537, -1e+30
        %v606 = vsel %vm590, %v538, -1e+30
        %v607 = vsel %vm591, %v539, -1e+30
        %v608 = vsel %vm592, %v540, -1e+30
        %v609 = vsel %vm593, %v541, -1e+30
        %v610 = vsel %vm594, %v542, -1e+30
        %v611 = vsel %vm595, %v543, -1e+30
        %v612 = vsel %vm596, %v544, -1e+30
        %v613 = vsel %vm597, %v545, -1e+30
        %v614 = vsel %vm598, %v546, -1e+30
        %v615 = vsel %vm599, %v547, -1e+30
        %v616 = vsel %vm600, %v548, -1e+30
        %v617 = vsel %vm601, %v549, -1e+30
        %v618 = vsel %vm602, %v550, -1e+30
        %619 = vmax.xlane.f32.xlu0 %v603
        %v620 = vpop.xlane.xlu0 %619
        %621 = vmax.xlane.f32.xlu0 %v604
        %v622 = vpop.xlane.xlu0 %621
        %623 = vmax.xlane.f32.xlu0 %v605
        %v624 = vpop.xlane.xlu0 %623
        %625 = vmax.xlane.f32.xlu0 %v606
        %v626 = vpop.xlane.xlu0 %625
        %627 = vmax.xlane.f32.xlu0 %v607
        %v628 = vpop.xlane.xlu0 %627
        %629 = vmax.xlane.f32.xlu0 %v608
        %v630 = vpop.xlane.xlu0 %629
        %631 = vmax.xlane.f32.xlu0 %v609
        %v632 = vpop.xlane.xlu0 %631
        %633 = vmax.xlane.f32.xlu0 %v610
        %v634 = vpop.xlane.xlu0 %633
        %635 = vmax.xlane.f32.xlu0 %v611
        %v636 = vpop.xlane.xlu0 %635
        %637 = vmax.xlane.f32.xlu0 %v612
        %v638 = vpop.xlane.xlu0 %637
        %639 = vmax.xlane.f32.xlu0 %v613
        %v640 = vpop.xlane.xlu0 %639
        %641 = vmax.xlane.f32.xlu0 %v614
        %v642 = vpop.xlane.xlu0 %641
        %643 = vmax.xlane.f32.xlu0 %v615
        %v644 = vpop.xlane.xlu0 %643
        %645 = vmax.xlane.f32.xlu0 %v616
        %v646 = vpop.xlane.xlu0 %645
        %647 = vmax.xlane.f32.xlu0 %v617
        %v648 = vpop.xlane.xlu0 %647
        %649 = vmax.xlane.f32.xlu0 %v618
        %v650 = vpop.xlane.xlu0 %649
        %v651 = vsub.f32 %v603, %v620
        %v652 = vsub.f32 %v604, %v622
        %v653 = vsub.f32 %v605, %v624
        %v654 = vsub.f32 %v606, %v626
        %v655 = vsub.f32 %v607, %v628
        %v656 = vsub.f32 %v608, %v630
        %v657 = vsub.f32 %v609, %v632
        %v658 = vsub.f32 %v610, %v634
        %v659 = vsub.f32 %v611, %v636
        %v660 = vsub.f32 %v612, %v638
        %v661 = vsub.f32 %v613, %v640
        %v662 = vsub.f32 %v614, %v642
        %v663 = vsub.f32 %v615, %v644
        %v664 = vsub.f32 %v616, %v646
        %v665 = vsub.f32 %v617, %v648
        %v666 = vsub.f32 %v618, %v650
        %v667 = vmul.f32 %v651, 1.442695
        %v668 = vpow.pop %v667
        %v669 = vmul.f32 %v652, 1.442695
        %v670 = vpow.pop %v669
        %v671 = vmul.f32 %v653, 1.442695
        %v672 = vpow.pop %v671
        %v673 = vmul.f32 %v654, 1.442695
        %v674 = vpow.pop %v673
        %v675 = vmul.f32 %v655, 1.442695
        %v676 = vpow.pop %v675
        %v677 = vmul.f32 %v656, 1.442695
        %v678 = vpow.pop %v677
        %v679 = vmul.f32 %v657, 1.442695
        %v680 = vpow.pop %v679
        %v681 = vmul.f32 %v658, 1.442695
        %v682 = vpow.pop %v681
        %v683 = vmul.f32 %v659, 1.442695
        %v684 = vpow.pop %v683
        %v685 = vmul.f32 %v660, 1.442695
        %v686 = vpow.pop %v685
        %v687 = vmul.f32 %v661, 1.442695
        %v688 = vpow.pop %v687
        %v689 = vmul.f32 %v662, 1.442695
        %v690 = vpow.pop %v689
        %v691 = vmul.f32 %v663, 1.442695
        %v692 = vpow.pop %v691
        %v693 = vmul.f32 %v664, 1.442695
        %v694 = vpow.pop %v693
        %v695 = vmul.f32 %v665, 1.442695
        %v696 = vpow.pop %v695
        %v697 = vmul.f32 %v666, 1.442695
        %v698 = vpow.pop %v697
        %v699 = vsel %vm587, %v668, 0.0
        %v700 = vsel %vm588, %v670, 0.0
        %v701 = vsel %vm589, %v672, 0.0
        %v702 = vsel %vm590, %v674, 0.0
        %v703 = vsel %vm591, %v676, 0.0
        %v704 = vsel %vm592, %v678, 0.0
        %v705 = vsel %vm593, %v680, 0.0
        %v706 = vsel %vm594, %v682, 0.0
        %v707 = vsel %vm595, %v684, 0.0
        %v708 = vsel %vm596, %v686, 0.0
        %v709 = vsel %vm597, %v688, 0.0
        %v710 = vsel %vm598, %v690, 0.0
        %v711 = vsel %vm599, %v692, 0.0
        %v712 = vsel %vm600, %v694, 0.0
        %v713 = vsel %vm601, %v696, 0.0
        %v714 = vsel %vm602, %v698, 0.0
        %715 = vadd.xlane.f32.xlu0 %v699
        %v716 = vpop.xlane.xlu0 %715
        %717 = vadd.xlane.f32.xlu0 %v700
        %v718 = vpop.xlane.xlu0 %717
        %719 = vadd.xlane.f32.xlu0 %v701
        %v720 = vpop.xlane.xlu0 %719
        %721 = vadd.xlane.f32.xlu0 %v702
        %v722 = vpop.xlane.xlu0 %721
        %723 = vadd.xlane.f32.xlu0 %v703
        %v724 = vpop.xlane.xlu0 %723
        %725 = vadd.xlane.f32.xlu0 %v704
        %v726 = vpop.xlane.xlu0 %725
        %727 = vadd.xlane.f32.xlu0 %v705
        %v728 = vpop.xlane.xlu0 %727
        %729 = vadd.xlane.f32.xlu0 %v706
        %v730 = vpop.xlane.xlu0 %729
        %731 = vadd.xlane.f32.xlu0 %v707
        %v732 = vpop.xlane.xlu0 %731
        %733 = vadd.xlane.f32.xlu0 %v708
        %v734 = vpop.xlane.xlu0 %733
        %735 = vadd.xlane.f32.xlu0 %v709
        %v736 = vpop.xlane.xlu0 %735
        %737 = vadd.xlane.f32.xlu0 %v710
        %v738 = vpop.xlane.xlu0 %737
        %739 = vadd.xlane.f32.xlu0 %v711
        %v740 = vpop.xlane.xlu0 %739
        %741 = vadd.xlane.f32.xlu0 %v712
        %v742 = vpop.xlane.xlu0 %741
        %743 = vadd.xlane.f32.xlu0 %v713
        %v744 = vpop.xlane.xlu0 %743
        %745 = vadd.xlane.f32.xlu0 %v714
        %v746 = vpop.xlane.xlu0 %745
        %vm747 = vcmp.gt.f32.partialorder %v716, 0.0
        %vm748 = vcmp.gt.f32.partialorder %v718, 0.0
        %vm749 = vcmp.gt.f32.partialorder %v720, 0.0
        %vm750 = vcmp.gt.f32.partialorder %v722, 0.0
        %vm751 = vcmp.gt.f32.partialorder %v724, 0.0
        %vm752 = vcmp.gt.f32.partialorder %v726, 0.0
        %vm753 = vcmp.gt.f32.partialorder %v728, 0.0
        %vm754 = vcmp.gt.f32.partialorder %v730, 0.0
        %vm755 = vcmp.gt.f32.partialorder %v732, 0.0
        %vm756 = vcmp.gt.f32.partialorder %v734, 0.0
        %vm757 = vcmp.gt.f32.partialorder %v736, 0.0
        %vm758 = vcmp.gt.f32.partialorder %v738, 0.0
        %vm759 = vcmp.gt.f32.partialorder %v740, 0.0
        %vm760 = vcmp.gt.f32.partialorder %v742, 0.0
        %vm761 = vcmp.gt.f32.partialorder %v744, 0.0
        %vm762 = vcmp.gt.f32.partialorder %v746, 0.0
        %v763 = vsel %vm747, %v716, 1.0
        %v764 = vsel %vm748, %v718, 1.0
        %v765 = vsel %vm749, %v720, 1.0
        %v766 = vsel %vm750, %v722, 1.0
        %v767 = vsel %vm751, %v724, 1.0
        %v768 = vsel %vm752, %v726, 1.0
        %v769 = vsel %vm753, %v728, 1.0
        %v770 = vsel %vm754, %v730, 1.0
        %v771 = vsel %vm755, %v732, 1.0
        %v772 = vsel %vm756, %v734, 1.0
        %v773 = vsel %vm757, %v736, 1.0
        %v774 = vsel %vm758, %v738, 1.0
        %v775 = vsel %vm759, %v740, 1.0
        %v776 = vsel %vm760, %v742, 1.0
        %v777 = vsel %vm761, %v744, 1.0
        %v778 = vsel %vm762, %v746, 1.0
        %v779 = vrcp.pop %v763
        %v780 = vrcp.pop %v764
        %v781 = vrcp.pop %v765
        %v782 = vrcp.pop %v766
        %v783 = vrcp.pop %v767
        %v784 = vrcp.pop %v768
        %v785 = vrcp.pop %v769
        %v786 = vrcp.pop %v770
        %v787 = vrcp.pop %v771
        %v788 = vrcp.pop %v772
        %v789 = vrcp.pop %v773
        %v790 = vrcp.pop %v774
        %v791 = vrcp.pop %v775
        %v792 = vrcp.pop %v776
        %v793 = vrcp.pop %v777
        %v794 = vrcp.pop %v778
        %v795 = vmul.f32 %v699, %v779
        %v796 = vmul.f32 %v700, %v780
        %v797 = vmul.f32 %v701, %v781
        %v798 = vmul.f32 %v702, %v782
        %v799 = vmul.f32 %v703, %v783
        %v800 = vmul.f32 %v704, %v784
        %v801 = vmul.f32 %v705, %v785
        %v802 = vmul.f32 %v706, %v786
        %v803 = vmul.f32 %v707, %v787
        %v804 = vmul.f32 %v708, %v788
        %v805 = vmul.f32 %v709, %v789
        %v806 = vmul.f32 %v710, %v790
        %v807 = vmul.f32 %v711, %v791
        %v808 = vmul.f32 %v712, %v792
        %v809 = vmul.f32 %v713, %v793
        %v810 = vmul.f32 %v714, %v794
        %v811 = vld [vmem:[#allocation7] sm:$0xff]
        %v812 = vld [vmem:[#allocation7 + $0x8] sm:$0xff]
        %v813 = vld [vmem:[#allocation7 + $0x10] sm:$0xff]
        %v814 = vld [vmem:[#allocation7 + $0x18] sm:$0xff]
        %v815 = vld [vmem:[#allocation7 + $0x20] sm:$0xff]
        %v816 = vld [vmem:[#allocation7 + $0x28] sm:$0xff]
        %v817 = vld [vmem:[#allocation7 + $0x30] sm:$0xff]
        %v818 = vld [vmem:[#allocation7 + $0x38] sm:$0xff]
        %v819 = vld [vmem:[#allocation7 + $0x40] sm:$0xff]
        %v820 = vld [vmem:[#allocation7 + $0x48] sm:$0xff]
        %v821 = vld [vmem:[#allocation7 + $0x50] sm:$0xff]
        %v822 = vld [vmem:[#allocation7 + $0x58] sm:$0xff]
        %v823 = vld [vmem:[#allocation7 + $0x60] sm:$0xff]
        %v824 = vld [vmem:[#allocation7 + $0x68] sm:$0xff]
        %v825 = vld [vmem:[#allocation7 + $0x70] sm:$0xff]
        %v826 = vld [vmem:[#allocation7 + $0x78] sm:$0xff]
        %v827 = vld [vmem:[%s345] sm:$0xff]
        %v828 = vld [vmem:[%s345 + $0x8] sm:$0xff]
        %v829 = vld [vmem:[%s345 + $0x10] sm:$0xff]
        %v830 = vld [vmem:[%s345 + $0x18] sm:$0xff]
        %v831 = vld [vmem:[%s345 + $0x20] sm:$0xff]
        %v832 = vld [vmem:[%s345 + $0x28] sm:$0xff]
        %v833 = vld [vmem:[%s345 + $0x30] sm:$0xff]
        %v834 = vld [vmem:[%s345 + $0x38] sm:$0xff]
        %v835 = vld [vmem:[%s345 + $0x40] sm:$0xff]
        %v836 = vld [vmem:[%s345 + $0x48] sm:$0xff]
        %v837 = vld [vmem:[%s345 + $0x50] sm:$0xff]
        %v838 = vld [vmem:[%s345 + $0x58] sm:$0xff]
        %v839 = vld [vmem:[%s345 + $0x60] sm:$0xff]
        %v840 = vld [vmem:[%s345 + $0x68] sm:$0xff]
        %v841 = vld [vmem:[%s345 + $0x70] sm:$0xff]
        %v842 = vld [vmem:[%s345 + $0x78] sm:$0xff]
        %843 = vmatprep.subr.mxu0 0.0
        %844 = vmatpush1.msra.mxu0 %v827
        %845 = vmatprep.subr.mxu0 0.0
        %846 = vmatpush1.msra.mxu0 %v828
        %847 = vmatprep.subr.mxu0 0.0
        %848 = vmatpush1.msra.mxu0 %v829
        %849 = vmatprep.subr.mxu0 0.0
        %850 = vmatpush1.msra.mxu0 %v830
        %851 = vmatprep.subr.mxu0 0.0
        %852 = vmatpush1.msra.mxu0 %v831
        %853 = vmatprep.subr.mxu0 0.0
        %854 = vmatpush1.msra.mxu0 %v832
        %855 = vmatprep.subr.mxu0 0.0
        %856 = vmatpush1.msra.mxu0 %v833
        %857 = vmatprep.subr.mxu0 0.0
        %858 = vmatpush1.msra.mxu0 %v834
        %859 = vmatprep.subr.mxu0 0.0
        %860 = vmatpush1.msra.mxu0 %v835
        %861 = vmatprep.subr.mxu0 0.0
        %862 = vmatpush1.msra.mxu0 %v836
        %863 = vmatprep.subr.mxu0 0.0
        %864 = vmatpush1.msra.mxu0 %v837
        %865 = vmatprep.subr.mxu0 0.0
        %866 = vmatpush1.msra.mxu0 %v838
        %867 = vmatprep.subr.mxu0 0.0
        %868 = vmatpush1.msra.mxu0 %v839
        %869 = vmatprep.subr.mxu0 0.0
        %870 = vmatpush1.msra.mxu0 %v840
        %871 = vmatprep.subr.mxu0 0.0
        %872 = vmatpush1.msra.mxu0 %v841
        %873 = vmatprep.subr.mxu0 0.0
        %874 = vmatpush1.msra.mxu0 %v842
        %875 = vmatprep.subr.mxu0 0.0
        %876 = vmatpush1.msra.mxu0 0.0
        %877 = vmatprep.subr.mxu0 0.0
        %878 = vmatpush1.msra.mxu0 0.0
        %879 = vmatprep.subr.mxu0 0.0
        %880 = vmatpush1.msra.mxu0 0.0
        %881 = vmatprep.subr.mxu0 0.0
        %882 = vmatpush1.msra.mxu0 0.0
        %883 = vmatprep.subr.mxu0 0.0
        %884 = vmatpush1.msra.mxu0 0.0
        %885 = vmatprep.subr.mxu0 0.0
        %886 = vmatpush1.msra.mxu0 0.0
        %887 = vmatprep.subr.mxu0 0.0
        %888 = vmatpush1.msra.mxu0 0.0
        %889 = vmatprep.subr.mxu0 0.0
        %890 = vmatpush1.msra.mxu0 0.0
        %891 = vmatprep.subr.mxu0 0.0
        %892 = vmatpush1.msra.mxu0 0.0
        %893 = vmatprep.subr.mxu0 0.0
        %894 = vmatpush1.msra.mxu0 0.0
        %895 = vmatprep.subr.mxu0 0.0
        %896 = vmatpush1.msra.mxu0 0.0
        %897 = vmatprep.subr.mxu0 0.0
        %898 = vmatpush1.msra.mxu0 0.0
        %899 = vmatprep.subr.mxu0 0.0
        %900 = vmatpush1.msra.mxu0 0.0
        %901 = vmatprep.subr.mxu0 0.0
        %902 = vmatpush1.msra.mxu0 0.0
        %903 = vmatprep.subr.mxu0 0.0
        %904 = vmatpush1.msra.mxu0 0.0
        %905 = vmatprep.subr.mxu0 0.0
        %906 = vmatpush1.msra.mxu0 0.0
        %907 = vmatprep.mubr.f32.mxu0 0.0
        %908 = vmatmul.mubr.f32.gmra.mrb[0].mxu0 %v795
        %v909 = vpop.f32.mrb[0].mxu0
        %v910 = vadd.f32 0.0, %v909
        %v911 = vpop.f32.mrb[0].mxu0
        %912 = vmatprep.mubr.f32.mxu0 0.0
        %913 = vmatmul.mubr.f32.gmra.mrb[0].mxu0 %v796
        %v914 = vpop.f32.mrb[0].mxu0
        %v915 = vadd.f32 0.0, %v914
        %v916 = vpop.f32.mrb[0].mxu0
        %917 = vmatprep.mubr.f32.mxu0 0.0
        %918 = vmatmul.mubr.f32.gmra.mrb[0].mxu0 %v797
        %v919 = vpop.f32.mrb[0].mxu0
        %v920 = vadd.f32 0.0, %v919
        %v921 = vpop.f32.mrb[0].mxu0
        %922 = vmatprep.mubr.f32.mxu0 0.0
        %923 = vmatmul.mubr.f32.gmra.mrb[0].mxu0 %v798
        %v924 = vpop.f32.mrb[0].mxu0
        %v925 = vadd.f32 0.0, %v924
        %v926 = vpop.f32.mrb[0].mxu0
        %927 = vmatprep.mubr.f32.mxu0 0.0
        %928 = vmatmul.mubr.f32.gmra.mrb[0].mxu0 %v799
        %v929 = vpop.f32.mrb[0].mxu0
        %v930 = vadd.f32 0.0, %v929
        %v931 = vpop.f32.mrb[0].mxu0
        %932 = vmatprep.mubr.f32.mxu0 0.0
        %933 = vmatmul.mubr.f32.gmra.mrb[0].mxu0 %v800
        %v934 = vpop.f32.mrb[0].mxu0
        %v935 = vadd.f32 0.0, %v934
        %v936 = vpop.f32.mrb[0].mxu0
        %937 = vmatprep.mubr.f32.mxu0 0.0
        %938 = vmatmul.mubr.f32.gmra.mrb[0].mxu0 %v801
        %v939 = vpop.f32.mrb[0].mxu0
        %v940 = vadd.f32 0.0, %v939
        %v941 = vpop.f32.mrb[0].mxu0
        %942 = vmatprep.mubr.f32.mxu0 0.0
        %943 = vmatmul.mubr.f32.gmra.mrb[0].mxu0 %v802
        %v944 = vpop.f32.mrb[0].mxu0
        %v945 = vadd.f32 0.0, %v944
        %v946 = vpop.f32.mrb[0].mxu0
        %947 = vmatprep.mubr.f32.mxu0 0.0
        %948 = vmatmul.mubr.f32.gmra.mrb[0].mxu0 %v803
        %v949 = vpop.f32.mrb[0].mxu0
        %v950 = vadd.f32 0.0, %v949
        %v951 = vpop.f32.mrb[0].mxu0
        %952 = vmatprep.mubr.f32.mxu0 0.0
        %953 = vmatmul.mubr.f32.gmra.mrb[0].mxu0 %v804
        %v954 = vpop.f32.mrb[0].mxu0
        %v955 = vadd.f32 0.0, %v954
        %v956 = vpop.f32.mrb[0].mxu0
        %957 = vmatprep.mubr.f32.mxu0 0.0
        %958 = vmatmul.mubr.f32.gmra.mrb[0].mxu0 %v805
        %v959 = vpop.f32.mrb[0].mxu0
        %v960 = vadd.f32 0.0, %v959
        %v961 = vpop.f32.mrb[0].mxu0
        %962 = vmatprep.mubr.f32.mxu0 0.0
        %963 = vmatmul.mubr.f32.gmra.mrb[0].mxu0 %v806
        %v964 = vpop.f32.mrb[0].mxu0
        %v965 = vadd.f32 0.0, %v964
        %v966 = vpop.f32.mrb[0].mxu0
        %967 = vmatprep.mubr.f32.mxu0 0.0
        %968 = vmatmul.mubr.f32.gmra.mrb[0].mxu0 %v807
        %v969 = vpop.f32.mrb[0].mxu0
        %v970 = vadd.f32 0.0, %v969
        %v971 = vpop.f32.mrb[0].mxu0
        %972 = vmatprep.mubr.f32.mxu0 0.0
        %973 = vmatmul.mubr.f32.gmra.mrb[0].mxu0 %v808
        %v974 = vpop.f32.mrb[0].mxu0
        %v975 = vadd.f32 0.0, %v974
        %v976 = vpop.f32.mrb[0].mxu0
        %977 = vmatprep.mubr.f32.mxu0 0.0
        %978 = vmatmul.mubr.f32.gmra.mrb[0].mxu0 %v809
        %v979 = vpop.f32.mrb[0].mxu0
        %v980 = vadd.f32 0.0, %v979
        %v981 = vpop.f32.mrb[0].mxu0
        %982 = vmatprep.mubr.f32.mxu0 0.0
        %983 = vmatmul.mubr.f32.gmra.mrb[0].mxu0 %v810
        %v984 = vpop.f32.mrb[0].mxu0
        %v985 = vadd.f32 0.0, %v984
        %v986 = vpop.f32.mrb[0].mxu0
        %987 = vdwg.mxu0
        %v988 = vadd.f32 %v811, %v910
        %v989 = vadd.f32 %v812, %v915
        %v990 = vadd.f32 %v813, %v920
        %v991 = vadd.f32 %v814, %v925
        %v992 = vadd.f32 %v815, %v930
        %v993 = vadd.f32 %v816, %v935
        %v994 = vadd.f32 %v817, %v940
        %v995 = vadd.f32 %v818, %v945
        %v996 = vadd.f32 %v819, %v950
        %v997 = vadd.f32 %v820, %v955
        %v998 = vadd.f32 %v821, %v960
        %v999 = vadd.f32 %v822, %v965
        %v1000 = vadd.f32 %v823, %v970
        %v1001 = vadd.f32 %v824, %v975
        %v1002 = vadd.f32 %v825, %v980
        %v1003 = vadd.f32 %v826, %v985
        %1004 = vst [vmem:[#allocation7] sm:$0xff] %v988
        %1005 = vst [vmem:[#allocation7 + $0x8] sm:$0xff] %v989
        %1006 = vst [vmem:[#allocation7 + $0x10] sm:$0xff] %v990
        %1007 = vst [vmem:[#allocation7 + $0x18] sm:$0xff] %v991
        %1008 = vst [vmem:[#allocation7 + $0x20] sm:$0xff] %v992
        %1009 = vst [vmem:[#allocation7 + $0x28] sm:$0xff] %v993
        %1010 = vst [vmem:[#allocation7 + $0x30] sm:$0xff] %v994
        %1011 = vst [vmem:[#allocation7 + $0x38] sm:$0xff] %v995
        %1012 = vst [vmem:[#allocation7 + $0x40] sm:$0xff] %v996
        %1013 = vst [vmem:[#allocation7 + $0x48] sm:$0xff] %v997
        %1014 = vst [vmem:[#allocation7 + $0x50] sm:$0xff] %v998
        %1015 = vst [vmem:[#allocation7 + $0x58] sm:$0xff] %v999
        %1016 = vst [vmem:[#allocation7 + $0x60] sm:$0xff] %v1000
        %1017 = vst [vmem:[#allocation7 + $0x68] sm:$0xff] %v1001
        %1018 = vst [vmem:[#allocation7 + $0x70] sm:$0xff] %v1002
        %1019 = vst [vmem:[#allocation7 + $0x78] sm:$0xff] %v1003
        // Predicated region
        $region53: #{tpu_custom_call.1} parent=39 // pred_check
          %p1020 = pneg %p185
        $region54: #{tpu_custom_call.1} parent=39 // pred_check_branch
          %1022 = sbr.rel (%p1020) target = $region56
        $region55: #{tpu_custom_call.1} parent=39 // pred_region
          %s1023 = smul.u32 16, %s25
          %s1025 = ssub.s32 2048, 2048
          %1026 = vsyncadd [#allocation4], %s1025
          %s1027 = smul.addr %s1023, 128
          %s1028 = scalar_lea.hbm %s5, %s1027
          %s1029 = sshll.u32 [#allocation7], 4
          %s1030 = int_to_ptr.vmem [resolvable:$true] %s1029
          %1035 = dma.vmem_to_hbm [thread:$0]  %s1030, 2048, %s1028, [#allocation4], 128, 128, 8
        $region56: #{tpu_custom_call.1} parent=39 // pred_fallthru
          _
        // Predicated region
        $region57: #{tpu_custom_call.1} parent=39 // pred_check
          %p1036 = pneg %p185
        $region58: #{tpu_custom_call.1} parent=39 // pred_check_branch
          %1038 = sbr.rel (%p1036) target = $region60
        $region59: #{tpu_custom_call.1} parent=39 // pred_region
          %1039 = dma.done [#allocation4], 2048
        $region60: #{tpu_custom_call.1} parent=39 // pred_fallthru
          _
      $region40: #{tpu_custom_call.1} parent=5 // pred_fallthru
        _
      %p1040 = scmp.le.s32.totalorder 2, %s16
      // Predicated region
      $region61: #{tpu_custom_call.1} parent=5 // pred_check
        %p1041 = pneg %p1040
      $region62: #{tpu_custom_call.1} parent=5 // pred_check_branch
        %1043 = sbr.rel (%p1041) target = $region64
      $region63: #{tpu_custom_call.1} parent=5 // pred_region
        %s1044 = ssub.s32 %s16, 2
      $region64: #{tpu_custom_call.1} parent=5 // pred_fallthru
        _
    $region6: #{tpu_custom_call.1} parent=1 // loop_footer
      %s20 = sadd.s32 1, %s16
    $region7: #{tpu_custom_call.1} parent=1 // loop_footer_branch
      %15 = sbr.rel target = $region3
    $region8: #{tpu_custom_call.1} parent=1 // loop_exit
      _
    %1045 = vsyncpa [#allocation3], 1
    %s1046 = scalar_lea.sflag [#allocation3], 1
    %1047 = vsyncpa %s1046, 1
    %1048 = vsyncpa [#allocation6], 1
    %s1049 = scalar_lea.sflag [#allocation6], 1
    %1050 = vsyncpa %s1049, 1
    %1051 = vsyncpa [#allocation4], 1
    %s1052 = scalar_lea.sflag [#allocation4], 1
    %1053 = vsyncpa %s1052, 1

</llo_original>
